<compile_context>
chip_gen: v6e
topology: v6e:2x2x1
jax: 0.10.0
libtpu: 0.0.40
codegen_flags: <defaults>
</compile_context>

<pallas_src>
import functools
import math

import jax
import jax.numpy as jnp
from jax import lax
from jax.experimental import pallas as pl
from jax.experimental.pallas import tpu as pltpu


def _round_up(x, m):
    return (x + m - 1) // m * m


# ---------------------------------------------------------------------------
# Fast path: lane-dense 2-D slabs + cyclic head-shift trick.
# ---------------------------------------------------------------------------

def _sa_kernel(q_ref, k_ref, v_ref, m_ref, o_ref, *, heads, d, dv, scale):
    """One chunk of tokens; all work is per-token, no cross-token deps.

    q_ref/k_ref: (TN, H*D), v_ref: (TN, H*Dv),
    m_ref: (H*D, H*Dv) constant block-diagonal 0/1 matrix,
    o_ref: (TN, H*Dv).
    """
    q = q_ref[...]
    k = k_ref[...]
    v = v_ref[...]
    m = m_ref[...]
    hd = heads * d
    hdv = heads * dv

    acc = jnp.zeros(o_ref.shape, jnp.float32)
    for s in range(heads):
        if s == 0:
            k_s = k
            v_s = v
        else:
            # Cyclic shift by s head segments along the lane axis (XLU only).
            k_s = pltpu.roll(k, shift=hd - s * d, axis=1)
            v_s = pltpu.roll(v, shift=hdv - s * dv, axis=1)
        # prod[t, h*D + x] = q[t, h, x] * k[t, (h +/- s) % H, x]
        prod = q * k_s
        # One MXU pass against the 0/1 block-diagonal matrix performs the
        # segmented sum over each D-lane group AND broadcasts the score over
        # the matching Dv-lane group, accumulating exactly in f32.
        sseg = jnp.dot(prod, m, preferred_element_type=jnp.float32)
        # out[t, h, e] += score[t, h, g] * v[t, g, e]   with g = (h +/- s) % H
        acc = acc + sseg * v_s.astype(jnp.float32)

    o_ref[...] = (acc * scale).astype(o_ref.dtype)


def _selfattention_fast(q, k, v, out_dtype, scale):
    B, L, H, D = k.shape
    Dv = v.shape[3]
    HD, HDv = H * D, H * Dv
    N = B * L

    # Free (trailing-contiguous) reshapes to lane-dense 2-D slabs.
    q2 = q.reshape(N, HD)
    k2 = k.reshape(N, HD)
    v2 = v.reshape(N, HDv)

    # Constant block-diagonal 0/1 matrix: M[h*D + x, h*Dv + e] = 1.
    prod_dtype = jnp.result_type(q.dtype, k.dtype)
    row_head = jnp.arange(HD, dtype=jnp.int32) // D
    col_head = jnp.arange(HDv, dtype=jnp.int32) // Dv
    m = jnp.where(row_head[:, None] == col_head[None, :],
                  jnp.array(1, prod_dtype), jnp.array(0, prod_dtype))

    # ---- block-size selection (VMEM budget, everything lane-dense) ----
    itemsize_in = max(jnp.dtype(q.dtype).itemsize, jnp.dtype(k.dtype).itemsize,
                      jnp.dtype(v.dtype).itemsize)
    in_row = (2 * HD + HDv) * itemsize_in                  # one q/k/v row
    out_row = HDv * jnp.dtype(out_dtype).itemsize
    tmp_row = (2 * HD + 3 * HDv) * 4                       # k_s, prod, v_s, sseg, acc
    per_tok = 3 * in_row + 2 * out_row + tmp_row           # 2x pipeline + live copy
    m_vmem = 2 * HD * HDv * jnp.dtype(prod_dtype).itemsize
    budget = 18 * 1024 * 1024
    tokens = max(8, (budget - m_vmem) // per_tok)
    block_n = min(tokens - tokens % 8, 2048, _round_up(N, 8))
    block_n = max(block_n, 8)

    # Pad the token axis to a multiple of the block (zero tokens are inert).
    n_pad = _round_up(N, block_n)
    if n_pad != N:
        pad = n_pad - N
        q2 = jnp.pad(q2, ((0, pad), (0, 0)))
        k2 = jnp.pad(k2, ((0, pad), (0, 0)))
        v2 = jnp.pad(v2, ((0, pad), (0, 0)))

    kernel = functools.partial(_sa_kernel, heads=H, d=D, dv=Dv, scale=scale)

    out2 = pl.pallas_call(
        kernel,
        out_shape=jax.ShapeDtypeStruct((n_pad, HDv), out_dtype),
        grid_spec=pltpu.PrefetchScalarGridSpec(
            num_scalar_prefetch=0,
            grid=(n_pad // block_n,),
            in_specs=[
                pl.BlockSpec((block_n, HD), lambda i: (i, 0)),
                pl.BlockSpec((block_n, HD), lambda i: (i, 0)),
                pl.BlockSpec((block_n, HDv), lambda i: (i, 0)),
                # Constant matrix: same block every step -> stays VMEM-resident.
                pl.BlockSpec((HD, HDv), lambda i: (0, 0)),
            ],
            out_specs=pl.BlockSpec((block_n, HDv), lambda i: (i, 0)),
        ),
        compiler_params=pltpu.CompilerParams(
            dimension_semantics=("parallel",),     # megacore-shards on v7x
            vmem_limit_bytes=32 * 1024 * 1024,
        ),
    )(q2, k2, v2, m)

    return out2[:N].reshape(B, L, H, Dv)


# ---------------------------------------------------------------------------
# Fallback path: per-token batched dot_general on 4-D blocks (any shape).
# ---------------------------------------------------------------------------

def _sa_fallback_kernel(q_ref, k_ref, v_ref, o_ref, *, scale):
    q = q_ref[...]
    k = k_ref[...]
    v = v_ref[...]
    s = lax.dot_general(q, k, dimension_numbers=(((2,), (2,)), ((0,), (0,))),
                        preferred_element_type=jnp.float32)
    s = (s * scale).astype(v.dtype)
    o = lax.dot_general(s, v, dimension_numbers=(((2,), (1,)), ((0,), (0,))),
                        preferred_element_type=jnp.float32)
    o_ref[...] = o.astype(o_ref.dtype)


def _pick_divisor(n, cap):
    cap = min(cap, n)
    for c in range(cap, 0, -1):
        if n % c == 0 and (c % 8 == 0 or c == n):
            return c
    for c in range(cap, 0, -1):
        if n % c == 0:
            return c
    return n


def _selfattention_fallback(q, k, v, out_dtype, scale):
    B, L, H, D = k.shape
    Hq = q.shape[2]
    Dv = v.shape[3]
    block_l = _pick_divisor(L, 128)

    def spec(h, d):
        return pl.BlockSpec((None, block_l, h, d), lambda b, l: (b, l, 0, 0))

    return pl.pallas_call(
        functools.partial(_sa_fallback_kernel, scale=scale),
        out_shape=jax.ShapeDtypeStruct((B, L, Hq, Dv), out_dtype),
        grid_spec=pltpu.PrefetchScalarGridSpec(
            num_scalar_prefetch=0,
            grid=(B, L // block_l),
            in_specs=[spec(Hq, D), spec(H, D), spec(H, Dv)],
            out_specs=spec(Hq, Dv),
        ),
        compiler_params=pltpu.CompilerParams(
            dimension_semantics=("parallel", "parallel"),
            vmem_limit_bytes=32 * 1024 * 1024,
        ),
    )(q, k, v)


# ---------------------------------------------------------------------------
# Public entry point (matches the PyTorch module's forward).
# ---------------------------------------------------------------------------

def selfattention(q, k, v):
    """q: (B, L, Hq, D), k: (B, L, H, D), v: (B, L, H, Dv) -> (B, L, Hq, Dv)."""
    B, L, H, D = k.shape
    Hq, Dq = q.shape[2], q.shape[3]
    Dv = v.shape[3]
    out_dtype = jnp.result_type(q.dtype, k.dtype, v.dtype)
    scale = 1.0 / math.sqrt(D)

    fast_ok = (Hq == H and Dq == D
               and (H * D) % 128 == 0 and (H * Dv) % 128 == 0)
    if fast_ok:
        return _selfattention_fast(q, k, v, out_dtype, scale)
    return _selfattention_fallback(q, k, v, out_dtype, scale)


def _reference(q, k, v):
    d = k.shape[-1]
    a = jnp.einsum("blhd,blgd->blhg", q, k,
                   precision=lax.Precision.HIGHEST) / math.sqrt(d)
    return jnp.einsum("blhg,blge->blhe", a, v,
                      precision=lax.Precision.HIGHEST)


if __name__ == "__main__":
    # Small shapes consistent with the module's (batch, length, heads, d_tensor).
    B, L, H, D = 2, 8, 4, 32
    key = jax.random.PRNGKey(0)
    kq, kk, kv = jax.random.split(key, 3)
    q = jax.random.normal(kq, (B, L, H, D), dtype=jnp.float32)
    k = jax.random.normal(kk, (B, L, H, D), dtype=jnp.float32)
    v = jax.random.normal(kv, (B, L, H, D), dtype=jnp.float32)

    out = jax.block_until_ready(selfattention(q, k, v))

    ref = _reference(q, k, v)
    assert out.shape == ref.shape
    err = float(jnp.max(jnp.abs(out - ref)))
    assert jnp.allclose(out, ref, atol=1e-4, rtol=1e-4), err

    print("KERNEL_OK")
</pallas_src>

<mosaic_0001>
module attributes {stable_mosaic.version = 11 : i64} {
  func.func @_sa_kernel(%arg0: i32, %arg1: memref<16x128xf32, #tpu.memory_space<vmem>>, %arg2: memref<16x128xf32, #tpu.memory_space<vmem>>, %arg3: memref<16x128xf32, #tpu.memory_space<vmem>>, %arg4: memref<128x128xf32, #tpu.memory_space<vmem>>, %arg5: memref<16x128xf32, #tpu.memory_space<vmem>>) attributes {dimension_semantics = [#tpu.dimension_semantics<parallel>], iteration_bounds = array<i64: 1>, scalar_prefetch = 0 : i64, scratch_operands = 0 : i64, tpu.core_type = #tpu.core_type<tc>, window_params = [{transform_indices = @transform_0, window_bounds = array<i64: 16, 128>}, {transform_indices = @transform_1, window_bounds = array<i64: 16, 128>}, {transform_indices = @transform_2, window_bounds = array<i64: 16, 128>}, {pipeline_mode = #tpu.pipeline_mode<synchronous>, transform_indices = @transform_3, window_bounds = array<i64: 128, 128>}, {transform_indices = @transform_4, window_bounds = array<i64: 16, 128>}]} {
    %c0 = arith.constant 0 : index
    %c0_0 = arith.constant 0 : index
    %0 = vector.load %arg1[%c0, %c0_0] : memref<16x128xf32, #tpu.memory_space<vmem>>, vector<16x128xf32>
    %c0_1 = arith.constant 0 : index
    %c0_2 = arith.constant 0 : index
    %1 = vector.load %arg2[%c0_1, %c0_2] : memref<16x128xf32, #tpu.memory_space<vmem>>, vector<16x128xf32>
    %c0_3 = arith.constant 0 : index
    %c0_4 = arith.constant 0 : index
    %2 = vector.load %arg3[%c0_3, %c0_4] : memref<16x128xf32, #tpu.memory_space<vmem>>, vector<16x128xf32>
    %c0_5 = arith.constant 0 : index
    %c0_6 = arith.constant 0 : index
    %3 = vector.load %arg4[%c0_5, %c0_6] : memref<128x128xf32, #tpu.memory_space<vmem>>, vector<128x128xf32>
    %cst = arith.constant 0.000000e+00 : f32
    %4 = vector.broadcast %cst : f32 to vector<16x128xf32>
    %5 = arith.mulf %0, %1 : vector<16x128xf32>
    %cst_7 = arith.constant dense<0.000000e+00> : vector<16x128xf32>
    %6 = tpu.matmul %5, %3, %cst_7 {dimension_numbers = #tpu.dot_dimension_numbers<[1], [0], [0], [1], [0, 0, 1, 1], [], []>} : vector<16x128xf32>, vector<128x128xf32>, vector<16x128xf32> -> vector<16x128xf32>
    %7 = arith.mulf %6, %2 : vector<16x128xf32>
    %8 = arith.addf %4, %7 : vector<16x128xf32>
    %c96_i32 = arith.constant 96 : i32
    %9 = tpu.dynamic_rotate %1 by %c96_i32 dim 1 : vector<16x128xf32>, i32 -> vector<16x128xf32>
    %c96_i32_8 = arith.constant 96 : i32
    %10 = tpu.dynamic_rotate %2 by %c96_i32_8 dim 1 : vector<16x128xf32>, i32 -> vector<16x128xf32>
    %11 = arith.mulf %0, %9 : vector<16x128xf32>
    %cst_9 = arith.constant dense<0.000000e+00> : vector<16x128xf32>
    %12 = tpu.matmul %11, %3, %cst_9 {dimension_numbers = #tpu.dot_dimension_numbers<[1], [0], [0], [1], [0, 0, 1, 1], [], []>} : vector<16x128xf32>, vector<128x128xf32>, vector<16x128xf32> -> vector<16x128xf32>
    %13 = arith.mulf %12, %10 : vector<16x128xf32>
    %14 = arith.addf %8, %13 : vector<16x128xf32>
    %c64_i32 = arith.constant 64 : i32
    %15 = tpu.dynamic_rotate %1 by %c64_i32 dim 1 : vector<16x128xf32>, i32 -> vector<16x128xf32>
    %c64_i32_10 = arith.constant 64 : i32
    %16 = tpu.dynamic_rotate %2 by %c64_i32_10 dim 1 : vector<16x128xf32>, i32 -> vector<16x128xf32>
    %17 = arith.mulf %0, %15 : vector<16x128xf32>
    %cst_11 = arith.constant dense<0.000000e+00> : vector<16x128xf32>
    %18 = tpu.matmul %17, %3, %cst_11 {dimension_numbers = #tpu.dot_dimension_numbers<[1], [0], [0], [1], [0, 0, 1, 1], [], []>} : vector<16x128xf32>, vector<128x128xf32>, vector<16x128xf32> -> vector<16x128xf32>
    %19 = arith.mulf %18, %16 : vector<16x128xf32>
    %20 = arith.addf %14, %19 : vector<16x128xf32>
    %c32_i32 = arith.constant 32 : i32
    %21 = tpu.dynamic_rotate %1 by %c32_i32 dim 1 : vector<16x128xf32>, i32 -> vector<16x128xf32>
    %c32_i32_12 = arith.constant 32 : i32
    %22 = tpu.dynamic_rotate %2 by %c32_i32_12 dim 1 : vector<16x128xf32>, i32 -> vector<16x128xf32>
    %23 = arith.mulf %0, %21 : vector<16x128xf32>
    %cst_13 = arith.constant dense<0.000000e+00> : vector<16x128xf32>
    %24 = tpu.matmul %23, %3, %cst_13 {dimension_numbers = #tpu.dot_dimension_numbers<[1], [0], [0], [1], [0, 0, 1, 1], [], []>} : vector<16x128xf32>, vector<128x128xf32>, vector<16x128xf32> -> vector<16x128xf32>
    %25 = arith.mulf %24, %22 : vector<16x128xf32>
    %26 = arith.addf %20, %25 : vector<16x128xf32>
    %cst_14 = arith.constant 0.176776692 : f32
    %27 = vector.broadcast %cst_14 : f32 to vector<16x128xf32>
    %28 = arith.mulf %26, %27 : vector<16x128xf32>
    %c0_15 = arith.constant 0 : index
    %c0_16 = arith.constant 0 : index
    %29 = vector.load %arg5[%c0_15, %c0_16] : memref<16x128xf32, #tpu.memory_space<vmem>>, vector<16x128xf32>
    tpu.vector_store %arg5[%c0_15, %c0_16], %28 {strides = array<i32>} : memref<16x128xf32, #tpu.memory_space<vmem>>, vector<16x128xf32>,
    return
  }
  func.func @transform_0(%arg0: i32) -> (i32, i32) {
    %c0_i32 = arith.constant 0 : i32
    %c0_i32_0 = arith.constant 0 : i32
    return %arg0, %c0_i32 : i32, i32
  }
  func.func @transform_1(%arg0: i32) -> (i32, i32) {
    %c0_i32 = arith.constant 0 : i32
    %c0_i32_0 = arith.constant 0 : i32
    return %arg0, %c0_i32 : i32, i32
  }
  func.func @transform_2(%arg0: i32) -> (i32, i32) {
    %c0_i32 = arith.constant 0 : i32
    %c0_i32_0 = arith.constant 0 : i32
    return %arg0, %c0_i32 : i32, i32
  }
  func.func @transform_3(%arg0: i32) -> (i32, i32) {
    %c0_i32 = arith.constant 0 : i32
    %c0_i32_0 = arith.constant 0 : i32
    %c0_i32_1 = arith.constant 0 : i32
    return %c0_i32, %c0_i32_0 : i32, i32
  }
  func.func @transform_4(%arg0: i32) -> (i32, i32) {
    %c0_i32 = arith.constant 0 : i32
    %c0_i32_0 = arith.constant 0 : i32
    return %arg0, %c0_i32 : i32, i32
  }
}

</mosaic_0001>

<llo_original>
// kernel: tpu_custom_call.1
$region0: #{tpu_custom_call.1}
  #allocation0 [shape = 'u32[]', space=smem, size = 0x4, offset = 0x4, fixed_abs, tag = 'smem constant byte address 0x4 - core index']
  #allocation1 [shape = 'u32[144,128]{1,0:T(1,128)}', space=vmem, size = 0x12000, scoped, tag = 'internal scratch']
  %s0 = inlined_call_operand.hbm [shape: f32[16,128], index: 0, kind: input, shape index: {}]
  %s1 = inlined_call_operand.hbm [shape: f32[16,128], index: 1, kind: input, shape index: {}]
  %s2 = inlined_call_operand.hbm [shape: f32[16,128], index: 2, kind: input, shape index: {}]
  %s3 = inlined_call_operand.hbm [shape: f32[128,128], index: 3, kind: input, shape index: {}]
  %s4 = inlined_call_operand.hbm [shape: f32[16,128], index: 4, kind: output, shape index: {}]
  %s5 = sld [smem:[#allocation0]]
  $region42: #{tpu_custom_call.1} parent=0
    _
  %s7 = ssub.s32 1, %s5
  %s8 = scalar_select 0, %s7, %s5
  $region1: #{tpu_custom_call.1} parent=0
    #allocation2 [shape = 'u8[8192]{0}', space=vmem, size = 0x2000, scoped, tag = 'input window, operand 0, single buffered']
    #allocation3 [shape = 's32[1]{0}', space=sflag, size = 0x4, scoped, tag = 'scoped memory for tpu_custom_call.1']
    #allocation4 [shape = 's32[1]{0}', space=sflag, size = 0x4, scoped, tag = 'scoped memory for tpu_custom_call.1']
    #allocation5 [shape = 'u8[8192]{0}', space=vmem, size = 0x2000, scoped, tag = 'input window, operand 1, single buffered']
    #allocation6 [shape = 's32[1]{0}', space=sflag, size = 0x4, scoped, tag = 'scoped memory for tpu_custom_call.1']
    #allocation7 [shape = 'u8[8192]{0}', space=vmem, size = 0x2000, scoped, tag = 'input window, operand 2, single buffered']
    #allocation8 [shape = 'u8[65536]{0}', space=vmem, size = 0x10000, scoped, tag = 'input window, operand 3, single buffered']
    #allocation9 [shape = 's32[1]{0}', space=sflag, size = 0x4, scoped, tag = 'scoped memory for tpu_custom_call.1']
    #allocation10 [shape = 'u8[8192]{0}', space=vmem, size = 0x2000, scoped, tag = 'output window, operand 0, single buffered']
    %9 = vsyncpa [#allocation3], 0
    %10 = vsyncpa [#allocation6], 0
    %11 = vsyncpa [#allocation9], 0
    %12 = vsyncpa [#allocation4], 0
    // Predicated region
    $region2: #{tpu_custom_call.1} parent=1 // pred_check
      _
    $region3: #{tpu_custom_call.1} parent=1 // pred_check_branch
      %14 = sbr.rel (0) target = $region5
    $region4: #{tpu_custom_call.1} parent=1 // pred_region
      %s16 = ssub.s32 256, 256
      %17 = vsyncadd [#allocation3], %s16
      %s18 = sshll.u32 [#allocation2], 4
      %s19 = int_to_ptr.vmem [resolvable:$true] %s18
      %24 = dma.hbm_to_vmem [thread:$0]  %s0, 256, %s19, [#allocation3], 128, 128, 8
    $region5: #{tpu_custom_call.1} parent=1 // pred_fallthru
      _
    // Predicated region
    $region6: #{tpu_custom_call.1} parent=1 // pred_check
      _
    $region7: #{tpu_custom_call.1} parent=1 // pred_check_branch
      %26 = sbr.rel (0) target = $region9
    $region8: #{tpu_custom_call.1} parent=1 // pred_region
      %s28 = ssub.s32 256, 256
      %29 = vsyncadd [#allocation6], %s28
      %s30 = sshll.u32 [#allocation5], 4
      %s31 = int_to_ptr.vmem [resolvable:$true] %s30
      %36 = dma.hbm_to_vmem [thread:$0]  %s1, 256, %s31, [#allocation6], 128, 128, 8
    $region9: #{tpu_custom_call.1} parent=1 // pred_fallthru
      _
    // Predicated region
    $region10: #{tpu_custom_call.1} parent=1 // pred_check
      _
    $region11: #{tpu_custom_call.1} parent=1 // pred_check_branch
      %38 = sbr.rel (0) target = $region13
    $region12: #{tpu_custom_call.1} parent=1 // pred_region
      %s40 = ssub.s32 256, 256
      %41 = vsyncadd [#allocation6], %s40
      %s42 = sshll.u32 [#allocation7], 4
      %s43 = int_to_ptr.vmem [resolvable:$true] %s42
      %48 = dma.hbm_to_vmem [thread:$0]  %s2, 256, %s43, [#allocation6], 128, 128, 8
    $region13: #{tpu_custom_call.1} parent=1 // pred_fallthru
      _
    // Predicated region
    $region14: #{tpu_custom_call.1} parent=1 // pred_check
      _
    $region15: #{tpu_custom_call.1} parent=1 // pred_check_branch
      %50 = sbr.rel (0) target = $region17
    $region16: #{tpu_custom_call.1} parent=1 // pred_region
      %s52 = ssub.s32 2048, 2048
      %53 = vsyncadd [#allocation9], %s52
      %s54 = sshll.u32 [#allocation8], 4
      %s55 = int_to_ptr.vmem [resolvable:$true] %s54
      %60 = dma.hbm_to_vmem [thread:$0]  %s3, 2048, %s55, [#allocation9], 128, 128, 8
    $region17: #{tpu_custom_call.1} parent=1 // pred_fallthru
      _
    // Predicated region
    $region18: #{tpu_custom_call.1} parent=1 // pred_check
      _
    $region19: #{tpu_custom_call.1} parent=1 // pred_check_branch
      %62 = sbr.rel (0) target = $region21
    $region20: #{tpu_custom_call.1} parent=1 // pred_region
      %63 = dma.done [#allocation3], 256
    $region21: #{tpu_custom_call.1} parent=1 // pred_fallthru
      _
    // Predicated region
    $region22: #{tpu_custom_call.1} parent=1 // pred_check
      _
    $region23: #{tpu_custom_call.1} parent=1 // pred_check_branch
      %65 = sbr.rel (0) target = $region25
    $region24: #{tpu_custom_call.1} parent=1 // pred_region
      %66 = dma.done [#allocation6], 256
    $region25: #{tpu_custom_call.1} parent=1 // pred_fallthru
      _
    // Predicated region
    $region26: #{tpu_custom_call.1} parent=1 // pred_check
      _
    $region27: #{tpu_custom_call.1} parent=1 // pred_check_branch
      %68 = sbr.rel (0) target = $region29
    $region28: #{tpu_custom_call.1} parent=1 // pred_region
      %69 = dma.done [#allocation6], 256
    $region29: #{tpu_custom_call.1} parent=1 // pred_fallthru
      _
    // Predicated region
    $region30: #{tpu_custom_call.1} parent=1 // pred_check
      _
    $region31: #{tpu_custom_call.1} parent=1 // pred_check_branch
      %71 = sbr.rel (0) target = $region33
    $region32: #{tpu_custom_call.1} parent=1 // pred_region
      %72 = dma.done [#allocation9], 2048
    $region33: #{tpu_custom_call.1} parent=1 // pred_fallthru
      _
    %v73 = vld [vmem:[#allocation2] sm:$0xff]
    %v74 = vld [vmem:[#allocation2 + $0x8] sm:$0xff]
    %v75 = vld [vmem:[#allocation5] sm:$0xff]
    %v76 = vld [vmem:[#allocation5 + $0x8] sm:$0xff]
    %v77 = vld [vmem:[#allocation7] sm:$0xff]
    %v78 = vld [vmem:[#allocation7 + $0x8] sm:$0xff]
    %v79 = vld [vmem:[#allocation8] sm:$0xff]
    %v80 = vld [vmem:[#allocation8 + $0x8] sm:$0xff]
    %v81 = vld [vmem:[#allocation8 + $0x10] sm:$0xff]
    %v82 = vld [vmem:[#allocation8 + $0x18] sm:$0xff]
    %v83 = vld [vmem:[#allocation8 + $0x20] sm:$0xff]
    %v84 = vld [vmem:[#allocation8 + $0x28] sm:$0xff]
    %v85 = vld [vmem:[#allocation8 + $0x30] sm:$0xff]
    %v86 = vld [vmem:[#allocation8 + $0x38] sm:$0xff]
    %v87 = vld [vmem:[#allocation8 + $0x40] sm:$0xff]
    %v88 = vld [vmem:[#allocation8 + $0x48] sm:$0xff]
    %v89 = vld [vmem:[#allocation8 + $0x50] sm:$0xff]
    %v90 = vld [vmem:[#allocation8 + $0x58] sm:$0xff]
    %v91 = vld [vmem:[#allocation8 + $0x60] sm:$0xff]
    %v92 = vld [vmem:[#allocation8 + $0x68] sm:$0xff]
    %v93 = vld [vmem:[#allocation8 + $0x70] sm:$0xff]
    %v94 = vld [vmem:[#allocation8 + $0x78] sm:$0xff]
    %v95 = vmul.f32 %v73, %v75
    %v96 = vmul.f32 %v74, %v76
    %97 = vmatprep.subr.mxu0 0.0
    %98 = vmatpush1.msra.mxu0 %v94
    %99 = vmatprep.subr.mxu0 0.0
    %100 = vmatpush1.msra.mxu0 %v93
    %101 = vmatprep.subr.mxu0 0.0
    %102 = vmatpush1.msra.mxu0 %v92
    %103 = vmatprep.subr.mxu0 0.0
    %104 = vmatpush1.msra.mxu0 %v91
    %105 = vmatprep.subr.mxu0 0.0
    %106 = vmatpush1.msra.mxu0 %v90
    %107 = vmatprep.subr.mxu0 0.0
    %108 = vmatpush1.msra.mxu0 %v89
    %109 = vmatprep.subr.mxu0 0.0
    %110 = vmatpush1.msra.mxu0 %v88
    %111 = vmatprep.subr.mxu0 0.0
    %112 = vmatpush1.msra.mxu0 %v87
    %113 = vmatprep.subr.mxu0 0.0
    %114 = vmatpush1.msra.mxu0 %v86
    %115 = vmatprep.subr.mxu0 0.0
    %116 = vmatpush1.msra.mxu0 %v85
    %117 = vmatprep.subr.mxu0 0.0
    %118 = vmatpush1.msra.mxu0 %v84
    %119 = vmatprep.subr.mxu0 0.0
    %120 = vmatpush1.msra.mxu0 %v83
    %121 = vmatprep.subr.mxu0 0.0
    %122 = vmatpush1.msra.mxu0 %v82
    %123 = vmatprep.subr.mxu0 0.0
    %124 = vmatpush1.msra.mxu0 %v81
    %125 = vmatprep.subr.mxu0 0.0
    %126 = vmatpush1.msra.mxu0 %v80
    %127 = vmatprep.subr.mxu0 0.0
    %128 = vmatpush1.msra.mxu0 %v79
    %129 = vmatprep.subr.mxu0 0.0
    %130 = vmatpush2.msra.mxu0 0.0
    %131 = vmatprep.subr.mxu0 0.0
    %132 = vmatpush2.msra.mxu0 0.0
    %133 = vmatprep.subr.mxu0 0.0
    %134 = vmatpush2.msra.mxu0 0.0
    %135 = vmatprep.subr.mxu0 0.0
    %136 = vmatpush2.msra.mxu0 0.0
    %137 = vmatprep.subr.mxu0 0.0
    %138 = vmatpush2.msra.mxu0 0.0
    %139 = vmatprep.subr.mxu0 0.0
    %140 = vmatpush2.msra.mxu0 0.0
    %141 = vmatprep.subr.mxu0 0.0
    %142 = vmatpush2.msra.mxu0 0.0
    %143 = vmatprep.subr.mxu0 0.0
    %144 = vmatpush2.msra.mxu0 0.0
    %145 = vmatprep.subr.mxu0 0.0
    %146 = vmatpush2.msra.mxu0 0.0
    %147 = vmatprep.subr.mxu0 0.0
    %148 = vmatpush2.msra.mxu0 0.0
    %149 = vmatprep.subr.mxu0 0.0
    %150 = vmatpush2.msra.mxu0 0.0
    %151 = vmatprep.subr.mxu0 0.0
    %152 = vmatpush2.msra.mxu0 0.0
    %153 = vmatprep.subr.mxu0 0.0
    %154 = vmatpush2.msra.mxu0 0.0
    %155 = vmatprep.subr.mxu0 0.0
    %156 = vmatpush2.msra.mxu0 0.0
    %157 = vmatprep.subr.mxu0 0.0
    %158 = vmatpush2.msra.mxu0 0.0
    %159 = vmatprep.subr.mxu0 0.0
    %160 = vmatpush2.msra.mxu0 0.0
    %161 = vmatprep.mubr.f32.mxu0 0.0
    %162 = vmatmul.mubr.f32.gmra.mxu0 %v95
    %v163 = vpop.f32.mrf.mxu0
    %v164 = vadd.f32 0.0, %v163
    %v165 = vpop.f32.mrf.mxu0
    %166 = vmatprep.mubr.f32.mxu0 0.0
    %167 = vmatmul.mubr.f32.gmra.mxu0 %v96
    %v168 = vpop.f32.mrf.mxu0
    %v169 = vadd.f32 0.0, %v168
    %v170 = vpop.f32.mrf.mxu0
    %171 = vdwg.mxu0
    %v172 = vmul.f32 %v164, %v77
    %v173 = vmul.f32 %v169, %v78
    %v174 = vadd.f32 %v172, 0.0
    %v175 = vadd.f32 %v173, 0.0
    %176 = vrot.lane.b32.xlu0 %v75, 96
    %v177 = vpop.permute.xlu0 %176
    %178 = vrot.lane.b32.xlu0 %v76, 96
    %v179 = vpop.permute.xlu0 %178
    %180 = vrot.lane.b32.xlu0 %v77, 96
    %v181 = vpop.permute.xlu0 %180
    %182 = vrot.lane.b32.xlu0 %v78, 96
    %v183 = vpop.permute.xlu0 %182
    %v184 = vmul.f32 %v73, %v177
    %v185 = vmul.f32 %v74, %v179
    %186 = vmatprep.subr.mxu0 0.0
    %187 = vmatpush1.msra.mxu0 %v94
    %188 = vmatprep.subr.mxu0 0.0
    %189 = vmatpush1.msra.mxu0 %v93
    %190 = vmatprep.subr.mxu0 0.0
    %191 = vmatpush1.msra.mxu0 %v92
    %192 = vmatprep.subr.mxu0 0.0
    %193 = vmatpush1.msra.mxu0 %v91
    %194 = vmatprep.subr.mxu0 0.0
    %195 = vmatpush1.msra.mxu0 %v90
    %196 = vmatprep.subr.mxu0 0.0
    %197 = vmatpush1.msra.mxu0 %v89
    %198 = vmatprep.subr.mxu0 0.0
    %199 = vmatpush1.msra.mxu0 %v88
    %200 = vmatprep.subr.mxu0 0.0
    %201 = vmatpush1.msra.mxu0 %v87
    %202 = vmatprep.subr.mxu0 0.0
    %203 = vmatpush1.msra.mxu0 %v86
    %204 = vmatprep.subr.mxu0 0.0
    %205 = vmatpush1.msra.mxu0 %v85
    %206 = vmatprep.subr.mxu0 0.0
    %207 = vmatpush1.msra.mxu0 %v84
    %208 = vmatprep.subr.mxu0 0.0
    %209 = vmatpush1.msra.mxu0 %v83
    %210 = vmatprep.subr.mxu0 0.0
    %211 = vmatpush1.msra.mxu0 %v82
    %212 = vmatprep.subr.mxu0 0.0
    %213 = vmatpush1.msra.mxu0 %v81
    %214 = vmatprep.subr.mxu0 0.0
    %215 = vmatpush1.msra.mxu0 %v80
    %216 = vmatprep.subr.mxu0 0.0
    %217 = vmatpush1.msra.mxu0 %v79
    %218 = vmatprep.subr.mxu0 0.0
    %219 = vmatpush2.msra.mxu0 0.0
    %220 = vmatprep.subr.mxu0 0.0
    %221 = vmatpush2.msra.mxu0 0.0
    %222 = vmatprep.subr.mxu0 0.0
    %223 = vmatpush2.msra.mxu0 0.0
    %224 = vmatprep.subr.mxu0 0.0
    %225 = vmatpush2.msra.mxu0 0.0
    %226 = vmatprep.subr.mxu0 0.0
    %227 = vmatpush2.msra.mxu0 0.0
    %228 = vmatprep.subr.mxu0 0.0
    %229 = vmatpush2.msra.mxu0 0.0
    %230 = vmatprep.subr.mxu0 0.0
    %231 = vmatpush2.msra.mxu0 0.0
    %232 = vmatprep.subr.mxu0 0.0
    %233 = vmatpush2.msra.mxu0 0.0
    %234 = vmatprep.subr.mxu0 0.0
    %235 = vmatpush2.msra.mxu0 0.0
    %236 = vmatprep.subr.mxu0 0.0
    %237 = vmatpush2.msra.mxu0 0.0
    %238 = vmatprep.subr.mxu0 0.0
    %239 = vmatpush2.msra.mxu0 0.0
    %240 = vmatprep.subr.mxu0 0.0
    %241 = vmatpush2.msra.mxu0 0.0
    %242 = vmatprep.subr.mxu0 0.0
    %243 = vmatpush2.msra.mxu0 0.0
    %244 = vmatprep.subr.mxu0 0.0
    %245 = vmatpush2.msra.mxu0 0.0
    %246 = vmatprep.subr.mxu0 0.0
    %247 = vmatpush2.msra.mxu0 0.0
    %248 = vmatprep.subr.mxu0 0.0
    %249 = vmatpush2.msra.mxu0 0.0
    %250 = vmatprep.mubr.f32.mxu0 0.0
    %251 = vmatmul.mubr.f32.gmra.mxu0 %v184
    %v252 = vpop.f32.mrf.mxu0
    %v253 = vadd.f32 0.0, %v252
    %v254 = vpop.f32.mrf.mxu0
    %255 = vmatprep.mubr.f32.mxu0 0.0
    %256 = vmatmul.mubr.f32.gmra.mxu0 %v185
    %v257 = vpop.f32.mrf.mxu0
    %v258 = vadd.f32 0.0, %v257
    %v259 = vpop.f32.mrf.mxu0
    %260 = vdwg.mxu0
    %v261 = vmul.f32 %v253, %v181
    %v262 = vmul.f32 %v258, %v183
    %v263 = vadd.f32 %v174, %v261
    %v264 = vadd.f32 %v175, %v262
    %265 = vrot.lane.b32.xlu0 %v75, 64
    %v266 = vpop.permute.xlu0 %265
    %267 = vrot.lane.b32.xlu0 %v76, 64
    %v268 = vpop.permute.xlu0 %267
    %269 = vrot.lane.b32.xlu0 %v77, 64
    %v270 = vpop.permute.xlu0 %269
    %271 = vrot.lane.b32.xlu0 %v78, 64
    %v272 = vpop.permute.xlu0 %271
    %v273 = vmul.f32 %v73, %v266
    %v274 = vmul.f32 %v74, %v268
    %275 = vmatprep.subr.mxu0 0.0
    %276 = vmatpush1.msra.mxu0 %v94
    %277 = vmatprep.subr.mxu0 0.0
    %278 = vmatpush1.msra.mxu0 %v93
    %279 = vmatprep.subr.mxu0 0.0
    %280 = vmatpush1.msra.mxu0 %v92
    %281 = vmatprep.subr.mxu0 0.0
    %282 = vmatpush1.msra.mxu0 %v91
    %283 = vmatprep.subr.mxu0 0.0
    %284 = vmatpush1.msra.mxu0 %v90
    %285 = vmatprep.subr.mxu0 0.0
    %286 = vmatpush1.msra.mxu0 %v89
    %287 = vmatprep.subr.mxu0 0.0
    %288 = vmatpush1.msra.mxu0 %v88
    %289 = vmatprep.subr.mxu0 0.0
    %290 = vmatpush1.msra.mxu0 %v87
    %291 = vmatprep.subr.mxu0 0.0
    %292 = vmatpush1.msra.mxu0 %v86
    %293 = vmatprep.subr.mxu0 0.0
    %294 = vmatpush1.msra.mxu0 %v85
    %295 = vmatprep.subr.mxu0 0.0
    %296 = vmatpush1.msra.mxu0 %v84
    %297 = vmatprep.subr.mxu0 0.0
    %298 = vmatpush1.msra.mxu0 %v83
    %299 = vmatprep.subr.mxu0 0.0
    %300 = vmatpush1.msra.mxu0 %v82
    %301 = vmatprep.subr.mxu0 0.0
    %302 = vmatpush1.msra.mxu0 %v81
    %303 = vmatprep.subr.mxu0 0.0
    %304 = vmatpush1.msra.mxu0 %v80
    %305 = vmatprep.subr.mxu0 0.0
    %306 = vmatpush1.msra.mxu0 %v79
    %307 = vmatprep.subr.mxu0 0.0
    %308 = vmatpush2.msra.mxu0 0.0
    %309 = vmatprep.subr.mxu0 0.0
    %310 = vmatpush2.msra.mxu0 0.0
    %311 = vmatprep.subr.mxu0 0.0
    %312 = vmatpush2.msra.mxu0 0.0
    %313 = vmatprep.subr.mxu0 0.0
    %314 = vmatpush2.msra.mxu0 0.0
    %315 = vmatprep.subr.mxu0 0.0
    %316 = vmatpush2.msra.mxu0 0.0
    %317 = vmatprep.subr.mxu0 0.0
    %318 = vmatpush2.msra.mxu0 0.0
    %319 = vmatprep.subr.mxu0 0.0
    %320 = vmatpush2.msra.mxu0 0.0
    %321 = vmatprep.subr.mxu0 0.0
    %322 = vmatpush2.msra.mxu0 0.0
    %323 = vmatprep.subr.mxu0 0.0
    %324 = vmatpush2.msra.mxu0 0.0
    %325 = vmatprep.subr.mxu0 0.0
    %326 = vmatpush2.msra.mxu0 0.0
    %327 = vmatprep.subr.mxu0 0.0
    %328 = vmatpush2.msra.mxu0 0.0
    %329 = vmatprep.subr.mxu0 0.0
    %330 = vmatpush2.msra.mxu0 0.0
    %331 = vmatprep.subr.mxu0 0.0
    %332 = vmatpush2.msra.mxu0 0.0
    %333 = vmatprep.subr.mxu0 0.0
    %334 = vmatpush2.msra.mxu0 0.0
    %335 = vmatprep.subr.mxu0 0.0
    %336 = vmatpush2.msra.mxu0 0.0
    %337 = vmatprep.subr.mxu0 0.0
    %338 = vmatpush2.msra.mxu0 0.0
    %339 = vmatprep.mubr.f32.mxu0 0.0
    %340 = vmatmul.mubr.f32.gmra.mxu0 %v273
    %v341 = vpop.f32.mrf.mxu0
    %v342 = vadd.f32 0.0, %v341
    %v343 = vpop.f32.mrf.mxu0
    %344 = vmatprep.mubr.f32.mxu0 0.0
    %345 = vmatmul.mubr.f32.gmra.mxu0 %v274
    %v346 = vpop.f32.mrf.mxu0
    %v347 = vadd.f32 0.0, %v346
    %v348 = vpop.f32.mrf.mxu0
    %349 = vdwg.mxu0
    %v350 = vmul.f32 %v342, %v270
    %v351 = vmul.f32 %v347, %v272
    %v352 = vadd.f32 %v263, %v350
    %v353 = vadd.f32 %v264, %v351
    %354 = vrot.lane.b32.xlu0 %v75, 32
    %v355 = vpop.permute.xlu0 %354
    %356 = vrot.lane.b32.xlu0 %v76, 32
    %v357 = vpop.permute.xlu0 %356
    %358 = vrot.lane.b32.xlu0 %v77, 32
    %v359 = vpop.permute.xlu0 %358
    %360 = vrot.lane.b32.xlu0 %v78, 32
    %v361 = vpop.permute.xlu0 %360
    %v362 = vmul.f32 %v73, %v355
    %v363 = vmul.f32 %v74, %v357
    %364 = vmatprep.subr.mxu0 0.0
    %365 = vmatpush1.msra.mxu0 %v94
    %366 = vmatprep.subr.mxu0 0.0
    %367 = vmatpush1.msra.mxu0 %v93
    %368 = vmatprep.subr.mxu0 0.0
    %369 = vmatpush1.msra.mxu0 %v92
    %370 = vmatprep.subr.mxu0 0.0
    %371 = vmatpush1.msra.mxu0 %v91
    %372 = vmatprep.subr.mxu0 0.0
    %373 = vmatpush1.msra.mxu0 %v90
    %374 = vmatprep.subr.mxu0 0.0
    %375 = vmatpush1.msra.mxu0 %v89
    %376 = vmatprep.subr.mxu0 0.0
    %377 = vmatpush1.msra.mxu0 %v88
    %378 = vmatprep.subr.mxu0 0.0
    %379 = vmatpush1.msra.mxu0 %v87
    %380 = vmatprep.subr.mxu0 0.0
    %381 = vmatpush1.msra.mxu0 %v86
    %382 = vmatprep.subr.mxu0 0.0
    %383 = vmatpush1.msra.mxu0 %v85
    %384 = vmatprep.subr.mxu0 0.0
    %385 = vmatpush1.msra.mxu0 %v84
    %386 = vmatprep.subr.mxu0 0.0
    %387 = vmatpush1.msra.mxu0 %v83
    %388 = vmatprep.subr.mxu0 0.0
    %389 = vmatpush1.msra.mxu0 %v82
    %390 = vmatprep.subr.mxu0 0.0
    %391 = vmatpush1.msra.mxu0 %v81
    %392 = vmatprep.subr.mxu0 0.0
    %393 = vmatpush1.msra.mxu0 %v80
    %394 = vmatprep.subr.mxu0 0.0
    %395 = vmatpush1.msra.mxu0 %v79
    %396 = vmatprep.subr.mxu0 0.0
    %397 = vmatpush2.msra.mxu0 0.0
    %398 = vmatprep.subr.mxu0 0.0
    %399 = vmatpush2.msra.mxu0 0.0
    %400 = vmatprep.subr.mxu0 0.0
    %401 = vmatpush2.msra.mxu0 0.0
    %402 = vmatprep.subr.mxu0 0.0
    %403 = vmatpush2.msra.mxu0 0.0
    %404 = vmatprep.subr.mxu0 0.0
    %405 = vmatpush2.msra.mxu0 0.0
    %406 = vmatprep.subr.mxu0 0.0
    %407 = vmatpush2.msra.mxu0 0.0
    %408 = vmatprep.subr.mxu0 0.0
    %409 = vmatpush2.msra.mxu0 0.0
    %410 = vmatprep.subr.mxu0 0.0
    %411 = vmatpush2.msra.mxu0 0.0
    %412 = vmatprep.subr.mxu0 0.0
    %413 = vmatpush2.msra.mxu0 0.0
    %414 = vmatprep.subr.mxu0 0.0
    %415 = vmatpush2.msra.mxu0 0.0
    %416 = vmatprep.subr.mxu0 0.0
    %417 = vmatpush2.msra.mxu0 0.0
    %418 = vmatprep.subr.mxu0 0.0
    %419 = vmatpush2.msra.mxu0 0.0
    %420 = vmatprep.subr.mxu0 0.0
    %421 = vmatpush2.msra.mxu0 0.0
    %422 = vmatprep.subr.mxu0 0.0
    %423 = vmatpush2.msra.mxu0 0.0
    %424 = vmatprep.subr.mxu0 0.0
    %425 = vmatpush2.msra.mxu0 0.0
    %426 = vmatprep.subr.mxu0 0.0
    %427 = vmatpush2.msra.mxu0 0.0
    %428 = vmatprep.mubr.f32.mxu0 0.0
    %429 = vmatmul.mubr.f32.gmra.mxu0 %v362
    %v430 = vpop.f32.mrf.mxu0
    %v431 = vadd.f32 0.0, %v430
    %v432 = vpop.f32.mrf.mxu0
    %433 = vmatprep.mubr.f32.mxu0 0.0
    %434 = vmatmul.mubr.f32.gmra.mxu0 %v363
    %v435 = vpop.f32.mrf.mxu0
    %v436 = vadd.f32 0.0, %v435
    %v437 = vpop.f32.mrf.mxu0
    %438 = vdwg.mxu0
    %v439 = vmul.f32 %v431, %v359
    %v440 = vmul.f32 %v436, %v361
    %v441 = vadd.f32 %v352, %v439
    %v442 = vadd.f32 %v353, %v440
    %v443 = vmul.f32 %v441, 0.17677669
    %v444 = vmul.f32 %v442, 0.17677669
    %445 = vst [vmem:[#allocation10] sm:$0xff] %v443
    %446 = vst [vmem:[#allocation10 + $0x8] sm:$0xff] %v444
    // Predicated region
    $region34: #{tpu_custom_call.1} parent=1 // pred_check
      _
    $region35: #{tpu_custom_call.1} parent=1 // pred_check_branch
      %448 = sbr.rel (0) target = $region37
    $region36: #{tpu_custom_call.1} parent=1 // pred_region
      %s450 = ssub.s32 256, 256
      %451 = vsyncadd [#allocation4], %s450
      %s452 = sshll.u32 [#allocation10], 4
      %s453 = int_to_ptr.vmem [resolvable:$true] %s452
      %458 = dma.vmem_to_hbm [thread:$0]  %s453, 256, %s4, [#allocation4], 128, 128, 8
    $region37: #{tpu_custom_call.1} parent=1 // pred_fallthru
      _
    // Predicated region
    $region38: #{tpu_custom_call.1} parent=1 // pred_check
      _
    $region39: #{tpu_custom_call.1} parent=1 // pred_check_branch
      %460 = sbr.rel (0) target = $region41
    $region40: #{tpu_custom_call.1} parent=1 // pred_region
      %461 = dma.done [#allocation4], 256
    $region41: #{tpu_custom_call.1} parent=1 // pred_fallthru
      _
    %462 = vsyncpa [#allocation3], 1
    %463 = vsyncpa [#allocation6], 1
    %464 = vsyncpa [#allocation9], 1
    %465 = vsyncpa [#allocation4], 1

</llo_original>
